<compile_context>
chip_gen: v6e
topology: v6e:2x2x1
jax: 0.10.0
libtpu: 0.0.40
codegen_flags: <defaults>
</compile_context>

<pallas_src>
import functools

import jax
import jax.numpy as jnp
from jax.experimental import pallas as pl
from jax.experimental.pallas import tpu as pltpu

LANES = 128
SUBLANES = 8
MAX_BLOCK_ROWS = 4096      # 4096 x 128 x 4B = 2 MiB per f32 input tile
NUM_SLABS = 2              # leading "parallel" grid axis (one slab per v7x core)
VMEM_LIMIT_BYTES = 48 * 1024 * 1024   # fits v5e/v6e (128 MiB) and v7x (64 MiB)


def _mixed_loss_kernel(x_ref, t_ref, o_ref, acc_ref, *, gamma, gamma_int,
                       rows_valid, block_rows, steps, total_blocks,
                       needs_mask):
    c = pl.program_id(0)       # slab  ("parallel")
    i = pl.program_id(1)       # step  ("arbitrary", reduction)

    @pl.when(i == 0)
    def _():
        acc_ref[...] = jnp.zeros_like(acc_ref)

    x = x_ref[...].astype(jnp.float32)
    t = t_ref[...].astype(jnp.float32)

    # Shared transcendental / VALU pieces (t assumed binary, so |x*(2t-1)|==|x|).
    e = jnp.exp(-jnp.abs(x))           # EUP
    lp = jnp.log1p(e)                  # EUP: log(1 + exp(-|x|)) = softplus(-|x|)
    relu_x = jnp.maximum(x, 0.0)
    xt = x * t

    # BCE with logits: max(x,0) - x*t + log1p(exp(-|x|))
    bce = relu_x - xt + lp

    # sigmoid(x) = exp(min(x,0) - log1p(exp(-|x|)))  (no reciprocal needed)
    sig = jnp.exp((x - relu_x) - lp)   # EUP

    if gamma_int is not None:
        # Integer gamma (module default gamma=2): p = sigmoid(-x*(2t-1)) is
        # just sig / (1-sig) depending on t, and p**gamma is a few multiplies
        # -> one fewer exp per element.
        if gamma_int == 0:
            focal = bce
        else:
            p = jnp.where(t > 0.5, 1.0 - sig, sig)
            mod = p
            for _ in range(gamma_int - 1):
                mod = mod * p
            focal = mod * bce
    else:
        # General gamma: max(x*(2t-1), 0) = relu(x) - x + x*t for binary t.
        m = (relu_x - x) + xt
        focal = jnp.exp(-(m + lp) * gamma) * bce     # EUP

    def _accumulate(f_v, s_v, t_v):
        acc_ref[0:1, :] += jnp.sum(f_v, axis=0, keepdims=True)
        acc_ref[1:2, :] += jnp.sum(s_v * t_v, axis=0, keepdims=True)
        acc_ref[2:3, :] += jnp.sum(s_v, axis=0, keepdims=True)
        acc_ref[3:4, :] += jnp.sum(t_v, axis=0, keepdims=True)

    if needs_mask:
        blk = c * steps + i            # logical (un-clamped) block index

        @pl.when(blk < total_blocks - 1)
        def _():                        # fast path: fully valid block
            _accumulate(focal, sig, t)

        @pl.when(blk >= total_blocks - 1)
        def _():                        # edge / clamped-duplicate block
            row0 = blk * block_rows
            ridx = jax.lax.broadcasted_iota(jnp.int32, (block_rows, LANES), 0)
            valid = (row0 + ridx) < rows_valid
            _accumulate(jnp.where(valid, focal, 0.0),
                        jnp.where(valid, sig, 0.0),
                        jnp.where(valid, t, 0.0))
    else:
        _accumulate(focal, sig, t)

    @pl.when(i == steps - 1)
    def _():
        o_ref[...] = acc_ref[...]


def _partial_sums_jax(x, t, gamma):
    """Exact (non-binary-safe) partial sums for tiny tails / tiny inputs."""
    x = x.astype(jnp.float32)
    t = t.astype(jnp.float32)
    relu_x = jnp.maximum(x, 0.0)
    lp = jnp.log1p(jnp.exp(-jnp.abs(x)))
    bce = relu_x - x * t + lp
    invprobs = jax.nn.log_sigmoid(-x * (t * 2.0 - 1.0))
    focal = jnp.exp(invprobs * gamma) * bce
    sig = jax.nn.sigmoid(x)
    return jnp.sum(focal), jnp.sum(sig * t), jnp.sum(sig), jnp.sum(t)


def _req_sublanes(dtype):
    # f32 -> 8 sublanes, bf16/f16 -> 16, int8/bool -> 32.
    return max(SUBLANES, 32 // jnp.dtype(dtype).itemsize)


def mixed_loss(x, target, alpha, gamma):
    """MixedLoss.forward: alpha * focal(x, t) - log(dice_loss(x, t))."""
    n = x.size
    x_flat = jnp.ravel(x)
    t_flat = jnp.ravel(target)

    rows = n // LANES
    req = max(_req_sublanes(x_flat.dtype), _req_sublanes(t_flat.dtype))
    gamma_f = float(gamma)
    gamma_int = int(gamma_f) if (gamma_f.is_integer() and 0.0 <= gamma_f <= 8.0) else None

    focal_s = jnp.float32(0.0)
    inter_s = jnp.float32(0.0)
    sig_s = jnp.float32(0.0)
    t_s = jnp.float32(0.0)

    if rows >= req:
        n_main = rows * LANES
        if n_main == n:
            x2 = x_flat.reshape(rows, LANES)       # free reshape (contiguous)
            t2 = t_flat.reshape(rows, LANES)
        else:
            # Ragged n: only the 128-aligned prefix goes to the kernel; the
            # <128-element tail is reduced in JAX below.  (No full jnp.pad.)
            x2 = jax.lax.slice(x_flat, (0,), (n_main,)).reshape(rows, LANES)
            t2 = jax.lax.slice(t_flat, (0,), (n_main,)).reshape(rows, LANES)

        block_rows = min(MAX_BLOCK_ROWS, (rows // req) * req)
        total_blocks = pl.cdiv(rows, block_rows)
        num_slabs = min(NUM_SLABS, total_blocks)
        steps = pl.cdiv(total_blocks, num_slabs)
        # Mask only needed if the last block is partial or a slab has a
        # clamped duplicate block.
        needs_mask = (rows % block_rows != 0) or (num_slabs * steps != total_blocks)

        kernel = functools.partial(
            _mixed_loss_kernel,
            gamma=gamma_f,
            gamma_int=gamma_int,
            rows_valid=rows,
            block_rows=block_rows,
            steps=steps,
            total_blocks=total_blocks,
            needs_mask=needs_mask,
        )

        def in_index_map(c, i):
            # Clamp so no block starts fully out of bounds; clamped duplicate
            # blocks are zeroed by the (gated) in-kernel validity mask.
            return (jnp.minimum(c * steps + i, total_blocks - 1), 0)

        in_spec = pl.BlockSpec((block_rows, LANES), in_index_map)

        sums = pl.pallas_call(
            kernel,
            out_shape=jax.ShapeDtypeStruct((num_slabs, SUBLANES, LANES),
                                           jnp.float32),
            grid_spec=pltpu.PrefetchScalarGridSpec(
                num_scalar_prefetch=0,
                grid=(num_slabs, steps),
                in_specs=[in_spec, in_spec],
                out_specs=pl.BlockSpec((None, SUBLANES, LANES),
                                       lambda c, i: (c, 0, 0)),
                scratch_shapes=[pltpu.VMEM((SUBLANES, LANES), jnp.float32)],
            ),
            compiler_params=pltpu.CompilerParams(
                dimension_semantics=("parallel", "arbitrary"),
                vmem_limit_bytes=VMEM_LIMIT_BYTES),
        )(x2, t2)

        focal_s = jnp.sum(sums[:, 0, :])
        inter_s = jnp.sum(sums[:, 1, :])
        sig_s = jnp.sum(sums[:, 2, :])
        t_s = jnp.sum(sums[:, 3, :])
    else:
        # Fewer than 8 full 128-lane rows (< ~1K elements): not worth a kernel.
        n_main = 0

    if n_main < n:
        tf, ti, ts, tt = _partial_sums_jax(x_flat[n_main:], t_flat[n_main:],
                                           gamma_f)
        focal_s = focal_s + tf
        inter_s = inter_s + ti
        sig_s = sig_s + ts
        t_s = t_s + tt

    focal_mean = focal_s / jnp.float32(n)
    smooth = jnp.float32(1.0)
    dice = (2.0 * inter_s + smooth) / (sig_s + t_s + smooth)
    # .mean() on a scalar is the identity.
    return alpha * focal_mean - jnp.log(dice)


def _reference_mixed_loss(x, t, alpha, gamma):
    """Pure-JAX reference mirroring the PyTorch module."""
    x = x.astype(jnp.float32)
    t = t.astype(jnp.float32)
    max_val = jnp.clip(-x, 0.0, None)
    bce = x - x * t + max_val + jnp.log(jnp.exp(-max_val) + jnp.exp(-x - max_val))
    invprobs = jax.nn.log_sigmoid(-x * (t * 2.0 - 1.0))
    focal = jnp.mean(jnp.exp(invprobs * gamma) * bce)
    sig = jax.nn.sigmoid(x)
    inter = jnp.sum(sig * t)
    dice = (2.0 * inter + 1.0) / (jnp.sum(sig) + jnp.sum(t) + 1.0)
    return alpha * focal - jnp.log(dice)


if __name__ == "__main__":
    # Deterministic "parameters" of the module (from __init__).
    alpha = 10.0
    gamma = 2.0

    key = jax.random.PRNGKey(0)
    kx, kt = jax.random.split(key)
    x = jax.random.normal(kx, (2, 4, 16, 16), dtype=jnp.float32)            # logits
    target = (jax.random.uniform(kt, (2, 4, 16, 16)) > 0.5).astype(jnp.float32)

    loss = mixed_loss(x, target, alpha, gamma)
    loss = jax.block_until_ready(loss)

    ref = _reference_mixed_loss(x, target, alpha, gamma)
    assert jnp.allclose(loss, ref, rtol=1e-5, atol=1e-5), (loss, ref)

    print("KERNEL_OK")
</pallas_src>

<mosaic_0001>
module attributes {stable_mosaic.version = 11 : i64} {
  func.func @_mixed_loss_kernel(%arg0: i32, %arg1: i32, %arg2: memref<16x128xf32, #tpu.memory_space<vmem>>, %arg3: memref<16x128xf32, #tpu.memory_space<vmem>>, %arg4: memref<1x8x128xf32, #tpu.memory_space<vmem>>, %arg5: memref<8x128xf32, #tpu.memory_space<vmem>>) attributes {dimension_semantics = [#tpu.dimension_semantics<parallel>, #tpu.dimension_semantics<arbitrary>], iteration_bounds = array<i64: 1, 1>, scalar_prefetch = 0 : i64, scratch_operands = 1 : i64, tpu.core_type = #tpu.core_type<tc>, window_params = [{transform_indices = @transform_0, window_bounds = array<i64: 16, 128>}, {transform_indices = @transform_1, window_bounds = array<i64: 16, 128>}, {transform_indices = @transform_2, window_bounds = array<i64: 1, 8, 128>}]} {
    %c0_i32 = arith.constant 0 : i32
    %0 = arith.cmpi eq, %arg1, %c0_i32 : i32
    %1 = arith.extui %0 : i1 to i32
    %c0_i32_0 = arith.constant 0 : i32
    %2 = arith.cmpi ne, %1, %c0_i32_0 : i32
    scf.if %2 {
      %cst_26 = arith.constant 0.000000e+00 : f32
      %49 = vector.broadcast %cst_26 : f32 to vector<8x128xf32>
      %c0_27 = arith.constant 0 : index
      %c0_28 = arith.constant 0 : index
      %50 = vector.load %arg5[%c0_27, %c0_28] : memref<8x128xf32, #tpu.memory_space<vmem>>, vector<8x128xf32>
      tpu.vector_store %arg5[%c0_27, %c0_28], %49 {strides = array<i32>} : memref<8x128xf32, #tpu.memory_space<vmem>>, vector<8x128xf32>,
    } else {
    }
    %c0 = arith.constant 0 : index
    %c0_1 = arith.constant 0 : index
    %3 = vector.load %arg2[%c0, %c0_1] : memref<16x128xf32, #tpu.memory_space<vmem>>, vector<16x128xf32>
    %c0_2 = arith.constant 0 : index
    %c0_3 = arith.constant 0 : index
    %4 = vector.load %arg3[%c0_2, %c0_3] : memref<16x128xf32, #tpu.memory_space<vmem>>, vector<16x128xf32>
    %5 = math.absf %3 : vector<16x128xf32>
    %cst = arith.constant 0.000000e+00 : f32
    %6 = vector.broadcast %cst : f32 to vector<16x128xf32>
    %7 = arith.subf %6, %5 : vector<16x128xf32>
    %8 = math.exp %7 : vector<16x128xf32>
    %9 = math.log1p %8 : vector<16x128xf32>
    %cst_4 = arith.constant 0.000000e+00 : f32
    %10 = vector.broadcast %cst_4 : f32 to vector<16x128xf32>
    %11 = arith.maximumf %3, %10 : vector<16x128xf32>
    %12 = arith.mulf %3, %4 : vector<16x128xf32>
    %13 = arith.subf %11, %12 : vector<16x128xf32>
    %14 = arith.addf %13, %9 : vector<16x128xf32>
    %15 = arith.subf %3, %11 : vector<16x128xf32>
    %16 = arith.subf %15, %9 : vector<16x128xf32>
    %17 = math.exp %16 : vector<16x128xf32>
    %cst_5 = arith.constant 5.000000e-01 : f32
    %18 = vector.broadcast %cst_5 : f32 to vector<16x128xf32>
    %19 = arith.cmpf ogt, %4, %18 : vector<16x128xf32>
    %cst_6 = arith.constant 1.000000e+00 : f32
    %20 = vector.broadcast %cst_6 : f32 to vector<16x128xf32>
    %21 = arith.subf %20, %17 : vector<16x128xf32>
    %22 = arith.select %19, %21, %17 : vector<16x128xi1>, vector<16x128xf32>
    %23 = arith.mulf %22, %22 : vector<16x128xf32>
    %24 = arith.mulf %23, %14 : vector<16x128xf32>
    %c0_7 = arith.constant 0 : index
    %c0_8 = arith.constant 0 : index
    %25 = vector.load %arg5[%c0_7, %c0_8] : memref<8x128xf32, #tpu.memory_space<vmem>>, vector<1x128xf32>
    %cst_9 = arith.constant dense<0.000000e+00> : vector<128xf32>
    %26 = vector.multi_reduction <add>, %24, %cst_9 [0] : vector<16x128xf32> to vector<128xf32>
    %27 = vector.shape_cast %26 : vector<128xf32> to vector<1x128xf32>
    %28 = arith.addf %25, %27 : vector<1x128xf32>
    %c0_10 = arith.constant 0 : index
    %c0_11 = arith.constant 0 : index
    %29 = vector.load %arg5[%c0_10, %c0_11] : memref<8x128xf32, #tpu.memory_space<vmem>>, vector<1x128xf32>
    tpu.vector_store %arg5[%c0_10, %c0_11], %28 {strides = array<i32>} : memref<8x128xf32, #tpu.memory_space<vmem>>, vector<1x128xf32>,
    %c1 = arith.constant 1 : index
    %c0_12 = arith.constant 0 : index
    %30 = vector.load %arg5[%c1, %c0_12] : memref<8x128xf32, #tpu.memory_space<vmem>>, vector<1x128xf32>
    %31 = arith.mulf %17, %4 : vector<16x128xf32>
    %cst_13 = arith.constant dense<0.000000e+00> : vector<128xf32>
    %32 = vector.multi_reduction <add>, %31, %cst_13 [0] : vector<16x128xf32> to vector<128xf32>
    %33 = vector.shape_cast %32 : vector<128xf32> to vector<1x128xf32>
    %34 = arith.addf %30, %33 : vector<1x128xf32>
    %c1_14 = arith.constant 1 : index
    %c0_15 = arith.constant 0 : index
    %35 = vector.load %arg5[%c1_14, %c0_15] : memref<8x128xf32, #tpu.memory_space<vmem>>, vector<1x128xf32>
    tpu.vector_store %arg5[%c1_14, %c0_15], %34 {strides = array<i32>} : memref<8x128xf32, #tpu.memory_space<vmem>>, vector<1x128xf32>,
    %c2 = arith.constant 2 : index
    %c0_16 = arith.constant 0 : index
    %36 = vector.load %arg5[%c2, %c0_16] : memref<8x128xf32, #tpu.memory_space<vmem>>, vector<1x128xf32>
    %cst_17 = arith.constant dense<0.000000e+00> : vector<128xf32>
    %37 = vector.multi_reduction <add>, %17, %cst_17 [0] : vector<16x128xf32> to vector<128xf32>
    %38 = vector.shape_cast %37 : vector<128xf32> to vector<1x128xf32>
    %39 = arith.addf %36, %38 : vector<1x128xf32>
    %c2_18 = arith.constant 2 : index
    %c0_19 = arith.constant 0 : index
    %40 = vector.load %arg5[%c2_18, %c0_19] : memref<8x128xf32, #tpu.memory_space<vmem>>, vector<1x128xf32>
    tpu.vector_store %arg5[%c2_18, %c0_19], %39 {strides = array<i32>} : memref<8x128xf32, #tpu.memory_space<vmem>>, vector<1x128xf32>,
    %c3 = arith.constant 3 : index
    %c0_20 = arith.constant 0 : index
    %41 = vector.load %arg5[%c3, %c0_20] : memref<8x128xf32, #tpu.memory_space<vmem>>, vector<1x128xf32>
    %cst_21 = arith.constant dense<0.000000e+00> : vector<128xf32>
    %42 = vector.multi_reduction <add>, %4, %cst_21 [0] : vector<16x128xf32> to vector<128xf32>
    %43 = vector.shape_cast %42 : vector<128xf32> to vector<1x128xf32>
    %44 = arith.addf %41, %43 : vector<1x128xf32>
    %c3_22 = arith.constant 3 : index
    %c0_23 = arith.constant 0 : index
    %45 = vector.load %arg5[%c3_22, %c0_23] : memref<8x128xf32, #tpu.memory_space<vmem>>, vector<1x128xf32>
    tpu.vector_store %arg5[%c3_22, %c0_23], %44 {strides = array<i32>} : memref<8x128xf32, #tpu.memory_space<vmem>>, vector<1x128xf32>,
    %c0_i32_24 = arith.constant 0 : i32
    %46 = arith.cmpi eq, %arg1, %c0_i32_24 : i32
    %47 = arith.extui %46 : i1 to i32
    %c0_i32_25 = arith.constant 0 : i32
    %48 = arith.cmpi ne, %47, %c0_i32_25 : i32
    scf.if %48 {
      %c0_26 = arith.constant 0 : index
      %c0_27 = arith.constant 0 : index
      %49 = vector.load %arg5[%c0_26, %c0_27] : memref<8x128xf32, #tpu.memory_space<vmem>>, vector<8x128xf32>
      %c0_28 = arith.constant 0 : index
      %c0_29 = arith.constant 0 : index
      %c0_30 = arith.constant 0 : index
      %50 = vector.load %arg4[%c0_28, %c0_29, %c0_30] : memref<1x8x128xf32, #tpu.memory_space<vmem>>, vector<1x8x128xf32>
      %51 = vector.shape_cast %50 : vector<1x8x128xf32> to vector<8x128xf32>
      %52 = vector.shape_cast %49 : vector<8x128xf32> to vector<1x8x128xf32>
      tpu.vector_store %arg4[%c0_28, %c0_29, %c0_30], %52 {strides = array<i32>} : memref<1x8x128xf32, #tpu.memory_space<vmem>>, vector<1x8x128xf32>,
    } else {
    }
    return
  }
  func.func @transform_0(%arg0: i32, %arg1: i32) -> (i32, i32) {
    %c1_i32 = arith.constant 1 : i32
    %0 = arith.muli %arg0, %c1_i32 : i32
    %1 = arith.addi %0, %arg1 : i32
    %c0_i32 = arith.constant 0 : i32
    %2 = arith.minsi %1, %c0_i32 : i32
    %c0_i32_0 = arith.constant 0 : i32
    %c0_i32_1 = arith.constant 0 : i32
    return %2, %c0_i32_0 : i32, i32
  }
  func.func @transform_1(%arg0: i32, %arg1: i32) -> (i32, i32) {
    %c1_i32 = arith.constant 1 : i32
    %0 = arith.muli %arg0, %c1_i32 : i32
    %1 = arith.addi %0, %arg1 : i32
    %c0_i32 = arith.constant 0 : i32
    %2 = arith.minsi %1, %c0_i32 : i32
    %c0_i32_0 = arith.constant 0 : i32
    %c0_i32_1 = arith.constant 0 : i32
    return %2, %c0_i32_0 : i32, i32
  }
  func.func @transform_2(%arg0: i32, %arg1: i32) -> (i32, i32, i32) {
    %c0_i32 = arith.constant 0 : i32
    %c0_i32_0 = arith.constant 0 : i32
    %c0_i32_1 = arith.constant 0 : i32
    return %arg0, %c0_i32, %c0_i32_0 : i32, i32, i32
  }
}

</mosaic_0001>

<llo_original>
// kernel: tpu_custom_call.1
$region0: #{tpu_custom_call.1}
  #allocation0 [shape = 'u32[]', space=smem, size = 0x4, offset = 0x4, fixed_abs, tag = 'smem constant byte address 0x4 - core index']
  #allocation1 [shape = 'u32[144,128]{1,0:T(1,128)}', space=vmem, size = 0x12000, scoped, tag = 'internal scratch']
  #allocation2 [shape = 'f32[8,128]{1,0:T(8,128)}', space=vmem, size = 0x1000, scoped, tag = 'scratch operand']
  %s0 = inlined_call_operand.hbm [shape: f32[16,128], index: 0, kind: input, shape index: {}]
  %s1 = inlined_call_operand.hbm [shape: f32[16,128], index: 1, kind: input, shape index: {}]
  %s2 = inlined_call_operand.hbm [shape: f32[1,8,128], index: 2, kind: output, shape index: {}]
  %s3 = sld [smem:[#allocation0]]
  $region34: #{tpu_custom_call.1} parent=0
    _
  %s5 = ssub.s32 1, %s3
  %s6 = scalar_select 0, %s5, %s3
  $region1: #{tpu_custom_call.1} parent=0
    #allocation3 [shape = 'u8[8192]{0}', space=vmem, size = 0x2000, scoped, tag = 'input window, operand 0, single buffered']
    #allocation4 [shape = 's32[1]{0}', space=sflag, size = 0x4, scoped, tag = 'scoped memory for tpu_custom_call.1']
    #allocation5 [shape = 's32[1]{0}', space=sflag, size = 0x4, scoped, tag = 'scoped memory for tpu_custom_call.1']
    #allocation6 [shape = 'u8[8192]{0}', space=vmem, size = 0x2000, scoped, tag = 'input window, operand 1, single buffered']
    #allocation7 [shape = 's32[1]{0}', space=sflag, size = 0x4, scoped, tag = 'scoped memory for tpu_custom_call.1']
    #allocation8 [shape = 'u8[4096]{0}', space=vmem, size = 0x1000, scoped, tag = 'output window, operand 0, single buffered']
    %7 = vsyncpa [#allocation4], 0
    %8 = vsyncpa [#allocation7], 0
    %9 = vsyncpa [#allocation5], 0
    // Predicated region
    $region2: #{tpu_custom_call.1} parent=1 // pred_check
      _
    $region3: #{tpu_custom_call.1} parent=1 // pred_check_branch
      %11 = sbr.rel (0) target = $region5
    $region4: #{tpu_custom_call.1} parent=1 // pred_region
      %s12 = sadd.s32 0, 0
      %p13 = scmp.lt.s32.totalorder %s12, 0
      %s14 = scalar_select %p13, %s12, 0
      %s15 = smul.u32 2, %s14
      %s17 = ssub.s32 256, 256
      %18 = vsyncadd [#allocation4], %s17
      %s19 = smul.addr %s15, 128
      %s20 = scalar_lea.hbm %s0, %s19
      %s21 = sshll.u32 [#allocation3], 4
      %s22 = int_to_ptr.vmem [resolvable:$true] %s21
      %27 = dma.hbm_to_vmem [thread:$0]  %s20, 256, %s22, [#allocation4], 128, 128, 8
    $region5: #{tpu_custom_call.1} parent=1 // pred_fallthru
      _
    // Predicated region
    $region6: #{tpu_custom_call.1} parent=1 // pred_check
      _
    $region7: #{tpu_custom_call.1} parent=1 // pred_check_branch
      %29 = sbr.rel (0) target = $region9
    $region8: #{tpu_custom_call.1} parent=1 // pred_region
      %s30 = sadd.s32 0, 0
      %p31 = scmp.lt.s32.totalorder %s30, 0
      %s32 = scalar_select %p31, %s30, 0
      %s33 = smul.u32 2, %s32
      %s35 = ssub.s32 256, 256
      %36 = vsyncadd [#allocation7], %s35
      %s37 = smul.addr %s33, 128
      %s38 = scalar_lea.hbm %s1, %s37
      %s39 = sshll.u32 [#allocation6], 4
      %s40 = int_to_ptr.vmem [resolvable:$true] %s39
      %45 = dma.hbm_to_vmem [thread:$0]  %s38, 256, %s40, [#allocation7], 128, 128, 8
    $region9: #{tpu_custom_call.1} parent=1 // pred_fallthru
      _
    // Predicated region
    $region10: #{tpu_custom_call.1} parent=1 // pred_check
      _
    $region11: #{tpu_custom_call.1} parent=1 // pred_check_branch
      %47 = sbr.rel (0) target = $region13
    $region12: #{tpu_custom_call.1} parent=1 // pred_region
      %48 = dma.done [#allocation4], 256
    $region13: #{tpu_custom_call.1} parent=1 // pred_fallthru
      _
    // Predicated region
    $region14: #{tpu_custom_call.1} parent=1 // pred_check
      _
    $region15: #{tpu_custom_call.1} parent=1 // pred_check_branch
      %50 = sbr.rel (0) target = $region17
    $region16: #{tpu_custom_call.1} parent=1 // pred_region
      %51 = dma.done [#allocation7], 256
    $region17: #{tpu_custom_call.1} parent=1 // pred_fallthru
      _
    %s52 = sadd.s32 0, 0
    %p53 = scmp.lt.s32.totalorder %s52, 0
    %s54 = scalar_select %p53, %s52, 0
    %s55 = smul.u32 2, %s54
    %s56 = sadd.s32 0, 0
    %p57 = scmp.lt.s32.totalorder %s56, 0
    %s58 = scalar_select %p57, %s56, 0
    %s59 = smul.u32 2, %s58
    %p60 = scmp.eq.s32.totalorder 0, 0
    // Predicated region
    $region18: #{tpu_custom_call.1} parent=1 // pred_check
      %p61 = pneg %p60
    $region19: #{tpu_custom_call.1} parent=1 // pred_check_branch
      %63 = sbr.rel (%p61) target = $region21
    $region20: #{tpu_custom_call.1} parent=1 // pred_region
      %64 = vst [vmem:[#allocation2] sm:$0xff] 0.0
    $region21: #{tpu_custom_call.1} parent=1 // pred_fallthru
      _
    %v65 = vld [vmem:[#allocation3] sm:$0xff]
    %v66 = vld [vmem:[#allocation3 + $0x8] sm:$0xff]
    %v67 = vld [vmem:[#allocation6] sm:$0xff]
    %v68 = vld [vmem:[#allocation6 + $0x8] sm:$0xff]
    %v69 = vand.u32 2147483647, %v65
    %v70 = vand.u32 2147483647, %v66
    %v71 = vsub.f32 0.0, %v69
    %v72 = vsub.f32 0.0, %v70
    %v73 = vmul.f32 %v71, 1.442695
    %v74 = vpow.pop %v73
    %v75 = vmul.f32 %v72, 1.442695
    %v76 = vpow.pop %v75
    %v77 = vadd.f32 %v74, 1.0
    %v78 = vlog2.pop %v77
    %v79 = vmul.f32 %v78, 0.6931472
    %v80 = vmul.f32 -0.5, %v74
    %v81 = vadd.f32 %v80, 1.0
    %v82 = vmul.f32 %v81, %v74
    %v83 = vand.u32 2147483647, %v74
    %vm84 = vcmp.lt.f32.partialorder %v83, 0.0004427343
    %v85 = vsel %vm84, %v82, %v79
    %v86 = vadd.f32 %v76, 1.0
    %v87 = vlog2.pop %v86
    %v88 = vmul.f32 %v87, 0.6931472
    %v89 = vmul.f32 -0.5, %v76
    %v90 = vadd.f32 %v89, 1.0
    %v91 = vmul.f32 %v90, %v76
    %v92 = vand.u32 2147483647, %v76
    %vm93 = vcmp.lt.f32.partialorder %v92, 0.0004427343
    %v94 = vsel %vm93, %v91, %v88
    %v95 = vmax.f32 %v65, 0.0
    %v96 = vmax.f32 %v66, 0.0
    %v97 = vmul.f32 %v65, %v67
    %v98 = vmul.f32 %v66, %v68
    %v99 = vsub.f32 %v95, %v97
    %v100 = vsub.f32 %v96, %v98
    %v101 = vadd.f32 %v99, %v85
    %v102 = vadd.f32 %v100, %v94
    %v103 = vsub.f32 %v65, %v95
    %v104 = vsub.f32 %v66, %v96
    %v105 = vsub.f32 %v103, %v85
    %v106 = vsub.f32 %v104, %v94
    %v107 = vmul.f32 %v105, 1.442695
    %v108 = vpow.pop %v107
    %v109 = vmul.f32 %v106, 1.442695
    %v110 = vpow.pop %v109
    %vm111 = vcmp.gt.f32.partialorder %v67, 0.5
    %vm112 = vcmp.gt.f32.partialorder %v68, 0.5
    %v113 = vsub.f32 1.0, %v108
    %v114 = vsub.f32 1.0, %v110
    %v115 = vsel %vm111, %v113, %v108
    %v116 = vsel %vm112, %v114, %v110
    %v117 = vmul.f32 %v115, %v115
    %v118 = vmul.f32 %v116, %v116
    %v119 = vmul.f32 %v117, %v101
    %v120 = vmul.f32 %v118, %v102
    %v121 = vld [vmem:[#allocation2] sm:$0x1]
    %v122 = vadd.f32 %v119, %v120
    %v123 = vrot.slane %v122, 4
    %v124 = vadd.f32 %v122, %v123
    %v125 = vrot.slane %v124, 2
    %v126 = vadd.f32 %v124, %v125
    %v127 = vrot.slane %v126, 1
    %v128 = vadd.f32 %v126, %v127
    %v129 = vadd.f32 %v121, %v128
    %130 = vst [vmem:[#allocation2] sm:$0x1] %v129
    %v131 = vld [vmem:[#allocation2 + $0x1] sm:$0x1]
    %v132 = vmul.f32 %v108, %v67
    %v133 = vmul.f32 %v110, %v68
    %v134 = vadd.f32 %v132, %v133
    %v135 = vrot.slane %v134, 4
    %v136 = vadd.f32 %v134, %v135
    %v137 = vrot.slane %v136, 2
    %v138 = vadd.f32 %v136, %v137
    %v139 = vrot.slane %v138, 1
    %v140 = vadd.f32 %v138, %v139
    %v141 = vadd.f32 %v131, %v140
    %142 = vst [vmem:[#allocation2 + $0x1] sm:$0x1] %v141
    %v143 = vld [vmem:[#allocation2 + $0x2] sm:$0x1]
    %v144 = vadd.f32 %v108, %v110
    %v145 = vrot.slane %v144, 4
    %v146 = vadd.f32 %v144, %v145
    %v147 = vrot.slane %v146, 2
    %v148 = vadd.f32 %v146, %v147
    %v149 = vrot.slane %v148, 1
    %v150 = vadd.f32 %v148, %v149
    %v151 = vadd.f32 %v143, %v150
    %152 = vst [vmem:[#allocation2 + $0x2] sm:$0x1] %v151
    %v153 = vld [vmem:[#allocation2 + $0x3] sm:$0x1]
    %v154 = vadd.f32 %v67, %v68
    %v155 = vrot.slane %v154, 4
    %v156 = vadd.f32 %v154, %v155
    %v157 = vrot.slane %v156, 2
    %v158 = vadd.f32 %v156, %v157
    %v159 = vrot.slane %v158, 1
    %v160 = vadd.f32 %v158, %v159
    %v161 = vadd.f32 %v153, %v160
    %162 = vst [vmem:[#allocation2 + $0x3] sm:$0x1] %v161
    // Predicated region
    $region22: #{tpu_custom_call.1} parent=1 // pred_check
      %p163 = pneg %p60
    $region23: #{tpu_custom_call.1} parent=1 // pred_check_branch
      %165 = sbr.rel (%p163) target = $region25
    $region24: #{tpu_custom_call.1} parent=1 // pred_region
      %v166 = vld [vmem:[#allocation2] sm:$0xff]
      %167 = vst [vmem:[#allocation8] sm:$0xff] %v166
    $region25: #{tpu_custom_call.1} parent=1 // pred_fallthru
      _
    // Predicated region
    $region26: #{tpu_custom_call.1} parent=1 // pred_check
      _
    $region27: #{tpu_custom_call.1} parent=1 // pred_check_branch
      %169 = sbr.rel (0) target = $region29
    $region28: #{tpu_custom_call.1} parent=1 // pred_region
      %s171 = ssub.s32 128, 128
      %172 = vsyncadd [#allocation5], %s171
      %s174 = sshll.u32 [#allocation8], 4
      %s175 = int_to_ptr.vmem [resolvable:$true] %s174
      %177 = dma.vmem_to_hbm [thread:$0]  %s175, 128, %s2, [#allocation5]
    $region29: #{tpu_custom_call.1} parent=1 // pred_fallthru
      _
    // Predicated region
    $region30: #{tpu_custom_call.1} parent=1 // pred_check
      _
    $region31: #{tpu_custom_call.1} parent=1 // pred_check_branch
      %179 = sbr.rel (0) target = $region33
    $region32: #{tpu_custom_call.1} parent=1 // pred_region
      %180 = dma.done [#allocation5], 128
    $region33: #{tpu_custom_call.1} parent=1 // pred_fallthru
      _
    %181 = vsyncpa [#allocation4], 1
    %182 = vsyncpa [#allocation7], 1
    %183 = vsyncpa [#allocation5], 1

</llo_original>
